<compile_context>
chip_gen: v6e
topology: v6e:2x2x1
jax: 0.10.0
libtpu: 0.0.40
codegen_flags: <defaults>
</compile_context>

<pallas_src>
import jax
import jax.numpy as jnp
import numpy as np
from jax.experimental import pallas as pl
from jax.experimental.pallas import tpu as pltpu


def _round_up(x, m):
    return (x + m - 1) // m * m


def update_v_kernel(s_ref, e_ref, v_ref, mask_ref,      # tiled inputs
                    w1_ref, b1_ref, w2_ref, b2_ref,      # resident params
                    out_ref,                             # output tile
                    acc_ref):                            # VMEM f32 accumulator
    # Grid ids hoisted to top level of the kernel body (never inside pl.when).
    k = pl.program_id(1)
    nk = pl.num_programs(1)

    @pl.when(k == 0)
    def _():
        acc_ref[...] = jnp.zeros_like(acc_ref)

    # scatter-sum over this edge tile: acc += S_tile @ e_tile  (MXU, f32 accumulate)
    acc_ref[...] += jnp.dot(s_ref[...].astype(jnp.float32), e_ref[...],
                            preferred_element_type=jnp.float32)

    @pl.when(k == nk - 1)
    def _():
        agg = acc_ref[...]
        h = jnp.dot(agg, w1_ref[...], preferred_element_type=jnp.float32) + b1_ref[...]
        h = jnp.maximum(h, 0.0)                                           # ReLU
        h = jnp.dot(h, w2_ref[...], preferred_element_type=jnp.float32) + b2_ref[...]
        # rows >= (i.max() + 1) are the zero-padded rows of `out` in PyTorch
        out_ref[...] = v_ref[...] + h * mask_ref[...]


def update_v_forward(v, e, edge_index, params, *, tm_max=256, tk_max=512):
    n, hidden = v.shape
    n_edges = e.shape[0]

    h_p = _round_up(hidden, 128)                   # lane-dense feature width
    tm = min(tm_max, _round_up(n, 8))              # node-row tile
    n_p = _round_up(n, tm)
    tk = min(tk_max, _round_up(n_edges, 128))      # edge-column (reduction) tile
    e_p = _round_up(n_edges, tk)

    dst = edge_index[1].astype(jnp.int32)
    n_out = jnp.max(dst) + 1                       # len(out) in the PyTorch module

    # dense one-hot scatter matrix (one 1 per edge column), bf16-exact, zero-padded
    scat = jnp.zeros((n_p, e_p), jnp.float32)
    scat = scat.at[dst, jnp.arange(n_edges, dtype=jnp.int32)].set(1.0)
    scat = scat.astype(jnp.bfloat16)
    # TODO(synk): for E << N^2-scale graphs, replace the dense scatter matrix with a
    # CSR gather-accumulate via scalar-prefetched row offsets (P2) to avoid O(N*E) bytes.

    # per-row mask: 1.0 for rows < i.max()+1, else 0.0  (padded rows also 0)
    row_mask = (jnp.arange(n_p, dtype=jnp.int32) < n_out).astype(jnp.float32)
    row_mask = row_mask.reshape(n_p, 1)

    def pad2(a, rows, cols):
        return jnp.pad(a, ((0, rows - a.shape[0]), (0, cols - a.shape[1])))

    e_pad = pad2(e.astype(jnp.float32), e_p, h_p)
    v_pad = pad2(v.astype(jnp.float32), n_p, h_p)
    w1 = pad2(params["w1"].astype(jnp.float32), h_p, h_p)
    w2 = pad2(params["w2"].astype(jnp.float32), h_p, h_p)
    b1 = pad2(params["b1"].reshape(1, -1).astype(jnp.float32), 1, h_p)
    b2 = pad2(params["b2"].reshape(1, -1).astype(jnp.float32), 1, h_p)

    grid = (n_p // tm, e_p // tk)

    flops = 2 * n_p * e_p * h_p + 2 * (2 * n_p * h_p * h_p)
    bytes_accessed = (n_p * e_p * 2                       # bf16 scatter matrix
                      + grid[0] * e_p * h_p * 4           # e re-read per row tile
                      + 2 * n_p * h_p * 4 + n_p * 4       # v in, out, mask
                      + 2 * h_p * h_p * 4 + 2 * h_p * 4)  # weights / biases

    out = pl.pallas_call(
        update_v_kernel,
        out_shape=jax.ShapeDtypeStruct((n_p, h_p), jnp.float32),
        grid_spec=pltpu.PrefetchScalarGridSpec(
            num_scalar_prefetch=0,
            grid=grid,
            in_specs=[
                pl.BlockSpec((tm, tk), lambda i, k: (i, k)),    # scatter matrix
                pl.BlockSpec((tk, h_p), lambda i, k: (k, 0)),   # e
                pl.BlockSpec((tm, h_p), lambda i, k: (i, 0)),   # v
                pl.BlockSpec((tm, 1), lambda i, k: (i, 0)),     # row mask
                pl.BlockSpec((h_p, h_p), lambda i, k: (0, 0)),  # w1
                pl.BlockSpec((1, h_p), lambda i, k: (0, 0)),    # b1
                pl.BlockSpec((h_p, h_p), lambda i, k: (0, 0)),  # w2
                pl.BlockSpec((1, h_p), lambda i, k: (0, 0)),    # b2
            ],
            out_specs=pl.BlockSpec((tm, h_p), lambda i, k: (i, 0)),
            scratch_shapes=[pltpu.VMEM((tm, h_p), jnp.float32)],
        ),
        compiler_params=pltpu.CompilerParams(
            dimension_semantics=("parallel", "arbitrary"),
            vmem_limit_bytes=32 * 1024 * 1024,
        ),
        cost_estimate=pl.CostEstimate(
            flops=flops, transcendentals=0, bytes_accessed=bytes_accessed),
    )(scat, e_pad, v_pad, row_mask, w1, b1, w2, b2)

    return out[:n, :hidden]


def update_v_reference(v, e, edge_index, params):
    """Pure-JAX reference matching the PyTorch forward."""
    dst = edge_index[1].astype(jnp.int32)
    n_out = int(jnp.max(dst)) + 1
    agg = jax.ops.segment_sum(e, dst, num_segments=n_out)
    hi = jax.lax.Precision.HIGHEST
    h = jnp.maximum(jnp.dot(agg, params["w1"], precision=hi) + params["b1"], 0.0)
    h = jnp.dot(h, params["w2"], precision=hi) + params["b2"]
    out = jnp.zeros_like(v).at[:n_out, :].set(h)
    return v + out


def init_params(key, hidden):
    k1, k2, k3, k4 = jax.random.split(key, 4)
    scale = 1.0 / jnp.sqrt(jnp.float32(hidden))
    # w1/w2 are stored as (in, out) == torch lin.weight.T, so forward is x @ w + b.
    return {
        "w1": jax.random.uniform(k1, (hidden, hidden), jnp.float32, -scale, scale),
        "b1": jax.random.uniform(k2, (hidden,), jnp.float32, -scale, scale),
        "w2": jax.random.uniform(k3, (hidden, hidden), jnp.float32, -scale, scale),
        "b2": jax.random.uniform(k4, (hidden,), jnp.float32, -scale, scale),
    }


if __name__ == "__main__":
    N, E, HIDDEN = 8, 24, 32

    key = jax.random.PRNGKey(0)
    kv, ke, ki, kp = jax.random.split(key, 4)

    v = jax.random.normal(kv, (N, HIDDEN), jnp.float32)
    e = jax.random.normal(ke, (E, HIDDEN), jnp.float32)
    edge_index = jax.random.randint(ki, (2, E), 0, N, jnp.int32)
    params = init_params(kp, HIDDEN)

    out = update_v_forward(v, e, edge_index, params)
    jax.block_until_ready(out)
    assert out.shape == (N, HIDDEN)

    ref = update_v_reference(v, e, edge_index, params)
    np.testing.assert_allclose(np.asarray(out), np.asarray(ref),
                               rtol=1e-2, atol=1e-2)
    print("KERNEL_OK")
</pallas_src>

<mosaic_0001>
module attributes {stable_mosaic.version = 11 : i64} {
  func.func @update_v_kernel(%arg0: i32, %arg1: i32, %arg2: memref<8x128xbf16, #tpu.memory_space<vmem>>, %arg3: memref<128x128xf32, #tpu.memory_space<vmem>>, %arg4: memref<8x128xf32, #tpu.memory_space<vmem>>, %arg5: memref<8x1xf32, #tpu.memory_space<vmem>>, %arg6: memref<128x128xf32, #tpu.memory_space<vmem>>, %arg7: memref<1x128xf32, #tpu.memory_space<vmem>>, %arg8: memref<128x128xf32, #tpu.memory_space<vmem>>, %arg9: memref<1x128xf32, #tpu.memory_space<vmem>>, %arg10: memref<8x128xf32, #tpu.memory_space<vmem>>, %arg11: memref<8x128xf32, #tpu.memory_space<vmem>>) attributes {dimension_semantics = [#tpu.dimension_semantics<parallel>, #tpu.dimension_semantics<arbitrary>], iteration_bounds = array<i64: 1, 1>, scalar_prefetch = 0 : i64, scratch_operands = 1 : i64, tpu.core_type = #tpu.core_type<tc>, window_params = [{transform_indices = @transform_0, window_bounds = array<i64: 8, 128>}, {transform_indices = @transform_1, window_bounds = array<i64: 128, 128>}, {transform_indices = @transform_2, window_bounds = array<i64: 8, 128>}, {transform_indices = @transform_3, window_bounds = array<i64: 8, 1>}, {pipeline_mode = #tpu.pipeline_mode<synchronous>, transform_indices = @transform_4, window_bounds = array<i64: 128, 128>}, {pipeline_mode = #tpu.pipeline_mode<synchronous>, transform_indices = @transform_5, window_bounds = array<i64: 1, 128>}, {pipeline_mode = #tpu.pipeline_mode<synchronous>, transform_indices = @transform_6, window_bounds = array<i64: 128, 128>}, {pipeline_mode = #tpu.pipeline_mode<synchronous>, transform_indices = @transform_7, window_bounds = array<i64: 1, 128>}, {transform_indices = @transform_8, window_bounds = array<i64: 8, 128>}]} {
    %c0_i32 = arith.constant 0 : i32
    %0 = arith.cmpi eq, %arg1, %c0_i32 : i32
    %1 = arith.extui %0 : i1 to i32
    %c0_i32_0 = arith.constant 0 : i32
    %2 = arith.cmpi ne, %1, %c0_i32_0 : i32
    scf.if %2 {
      %cst_10 = arith.constant 0.000000e+00 : f32
      %13 = vector.broadcast %cst_10 : f32 to vector<8x128xf32>
      %c0_11 = arith.constant 0 : index
      %c0_12 = arith.constant 0 : index
      %14 = vector.load %arg11[%c0_11, %c0_12] : memref<8x128xf32, #tpu.memory_space<vmem>>, vector<8x128xf32>
      tpu.vector_store %arg11[%c0_11, %c0_12], %13 {strides = array<i32>} : memref<8x128xf32, #tpu.memory_space<vmem>>, vector<8x128xf32>,
    } else {
    }
    %c0 = arith.constant 0 : index
    %c0_1 = arith.constant 0 : index
    %3 = vector.load %arg11[%c0, %c0_1] : memref<8x128xf32, #tpu.memory_space<vmem>>, vector<8x128xf32>
    %c0_2 = arith.constant 0 : index
    %c0_3 = arith.constant 0 : index
    %4 = vector.load %arg2[%c0_2, %c0_3] : memref<8x128xbf16, #tpu.memory_space<vmem>>, vector<8x128xbf16>
    %5 = arith.extf %4 : vector<8x128xbf16> to vector<8x128xf32>
    %c0_4 = arith.constant 0 : index
    %c0_5 = arith.constant 0 : index
    %6 = vector.load %arg3[%c0_4, %c0_5] : memref<128x128xf32, #tpu.memory_space<vmem>>, vector<128x128xf32>
    %cst = arith.constant dense<0.000000e+00> : vector<8x128xf32>
    %7 = tpu.matmul %5, %6, %cst {dimension_numbers = #tpu.dot_dimension_numbers<[1], [0], [0], [1], [0, 0, 1, 1], [], []>} : vector<8x128xf32>, vector<128x128xf32>, vector<8x128xf32> -> vector<8x128xf32>
    %8 = arith.addf %3, %7 : vector<8x128xf32>
    %c0_6 = arith.constant 0 : index
    %c0_7 = arith.constant 0 : index
    %9 = vector.load %arg11[%c0_6, %c0_7] : memref<8x128xf32, #tpu.memory_space<vmem>>, vector<8x128xf32>
    tpu.vector_store %arg11[%c0_6, %c0_7], %8 {strides = array<i32>} : memref<8x128xf32, #tpu.memory_space<vmem>>, vector<8x128xf32>,
    %c0_i32_8 = arith.constant 0 : i32
    %10 = arith.cmpi eq, %arg1, %c0_i32_8 : i32
    %11 = arith.extui %10 : i1 to i32
    %c0_i32_9 = arith.constant 0 : i32
    %12 = arith.cmpi ne, %11, %c0_i32_9 : i32
    scf.if %12 {
      %c0_10 = arith.constant 0 : index
      %c0_11 = arith.constant 0 : index
      %13 = vector.load %arg11[%c0_10, %c0_11] : memref<8x128xf32, #tpu.memory_space<vmem>>, vector<8x128xf32>
      %c0_12 = arith.constant 0 : index
      %c0_13 = arith.constant 0 : index
      %14 = vector.load %arg6[%c0_12, %c0_13] : memref<128x128xf32, #tpu.memory_space<vmem>>, vector<128x128xf32>
      %cst_14 = arith.constant dense<0.000000e+00> : vector<8x128xf32>
      %15 = tpu.matmul %13, %14, %cst_14 {dimension_numbers = #tpu.dot_dimension_numbers<[1], [0], [0], [1], [0, 0, 1, 1], [], []>} : vector<8x128xf32>, vector<128x128xf32>, vector<8x128xf32> -> vector<8x128xf32>
      %c0_15 = arith.constant 0 : index
      %c0_16 = arith.constant 0 : index
      %16 = vector.load %arg7[%c0_15, %c0_16] : memref<1x128xf32, #tpu.memory_space<vmem>>, vector<1x128xf32>
      %17 = vector.broadcast %16 : vector<1x128xf32> to vector<8x128xf32>
      %18 = arith.addf %15, %17 : vector<8x128xf32>
      %cst_17 = arith.constant 0.000000e+00 : f32
      %19 = vector.broadcast %cst_17 : f32 to vector<8x128xf32>
      %20 = arith.maximumf %18, %19 : vector<8x128xf32>
      %c0_18 = arith.constant 0 : index
      %c0_19 = arith.constant 0 : index
      %21 = vector.load %arg8[%c0_18, %c0_19] : memref<128x128xf32, #tpu.memory_space<vmem>>, vector<128x128xf32>
      %cst_20 = arith.constant dense<0.000000e+00> : vector<8x128xf32>
      %22 = tpu.matmul %20, %21, %cst_20 {dimension_numbers = #tpu.dot_dimension_numbers<[1], [0], [0], [1], [0, 0, 1, 1], [], []>} : vector<8x128xf32>, vector<128x128xf32>, vector<8x128xf32> -> vector<8x128xf32>
      %c0_21 = arith.constant 0 : index
      %c0_22 = arith.constant 0 : index
      %23 = vector.load %arg9[%c0_21, %c0_22] : memref<1x128xf32, #tpu.memory_space<vmem>>, vector<1x128xf32>
      %24 = vector.broadcast %23 : vector<1x128xf32> to vector<8x128xf32>
      %25 = arith.addf %22, %24 : vector<8x128xf32>
      %c0_23 = arith.constant 0 : index
      %c0_24 = arith.constant 0 : index
      %26 = vector.load %arg4[%c0_23, %c0_24] : memref<8x128xf32, #tpu.memory_space<vmem>>, vector<8x128xf32>
      %c0_25 = arith.constant 0 : index
      %c0_26 = arith.constant 0 : index
      %27 = vector.load %arg5[%c0_25, %c0_26] : memref<8x1xf32, #tpu.memory_space<vmem>>, vector<8x1xf32>
      %28 = vector.broadcast %27 : vector<8x1xf32> to vector<8x128xf32>
      %29 = arith.mulf %25, %28 : vector<8x128xf32>
      %30 = arith.addf %26, %29 : vector<8x128xf32>
      %c0_27 = arith.constant 0 : index
      %c0_28 = arith.constant 0 : index
      %31 = vector.load %arg10[%c0_27, %c0_28] : memref<8x128xf32, #tpu.memory_space<vmem>>, vector<8x128xf32>
      tpu.vector_store %arg10[%c0_27, %c0_28], %30 {strides = array<i32>} : memref<8x128xf32, #tpu.memory_space<vmem>>, vector<8x128xf32>,
    } else {
    }
    return
  }
  func.func @transform_0(%arg0: i32, %arg1: i32) -> (i32, i32) {
    %c0_i32 = arith.constant 0 : i32
    return %arg0, %arg1 : i32, i32
  }
  func.func @transform_1(%arg0: i32, %arg1: i32) -> (i32, i32) {
    %c0_i32 = arith.constant 0 : i32
    %c0_i32_0 = arith.constant 0 : i32
    return %arg1, %c0_i32 : i32, i32
  }
  func.func @transform_2(%arg0: i32, %arg1: i32) -> (i32, i32) {
    %c0_i32 = arith.constant 0 : i32
    %c0_i32_0 = arith.constant 0 : i32
    return %arg0, %c0_i32 : i32, i32
  }
  func.func @transform_3(%arg0: i32, %arg1: i32) -> (i32, i32) {
    %c0_i32 = arith.constant 0 : i32
    %c0_i32_0 = arith.constant 0 : i32
    return %arg0, %c0_i32 : i32, i32
  }
  func.func @transform_4(%arg0: i32, %arg1: i32) -> (i32, i32) {
    %c0_i32 = arith.constant 0 : i32
    %c0_i32_0 = arith.constant 0 : i32
    %c0_i32_1 = arith.constant 0 : i32
    return %c0_i32, %c0_i32_0 : i32, i32
  }
  func.func @transform_5(%arg0: i32, %arg1: i32) -> (i32, i32) {
    %c0_i32 = arith.constant 0 : i32
    %c0_i32_0 = arith.constant 0 : i32
    %c0_i32_1 = arith.constant 0 : i32
    return %c0_i32, %c0_i32_0 : i32, i32
  }
  func.func @transform_6(%arg0: i32, %arg1: i32) -> (i32, i32) {
    %c0_i32 = arith.constant 0 : i32
    %c0_i32_0 = arith.constant 0 : i32
    %c0_i32_1 = arith.constant 0 : i32
    return %c0_i32, %c0_i32_0 : i32, i32
  }
  func.func @transform_7(%arg0: i32, %arg1: i32) -> (i32, i32) {
    %c0_i32 = arith.constant 0 : i32
    %c0_i32_0 = arith.constant 0 : i32
    %c0_i32_1 = arith.constant 0 : i32
    return %c0_i32, %c0_i32_0 : i32, i32
  }
  func.func @transform_8(%arg0: i32, %arg1: i32) -> (i32, i32) {
    %c0_i32 = arith.constant 0 : i32
    %c0_i32_0 = arith.constant 0 : i32
    return %arg0, %c0_i32 : i32, i32
  }
}

</mosaic_0001>

<llo_original>
// kernel: tpu_custom_call.1
$region0: #{tpu_custom_call.1}
  #allocation0 [shape = 'u32[]', space=smem, size = 0x4, offset = 0x4, fixed_abs, tag = 'smem constant byte address 0x4 - core index']
  #allocation1 [shape = 'u32[144,128]{1,0:T(1,128)}', space=vmem, size = 0x12000, scoped, tag = 'internal scratch']
  #allocation2 [shape = 'f32[8,128]{1,0:T(8,128)}', space=vmem, size = 0x1000, scoped, tag = 'scratch operand']
  %s0 = inlined_call_operand.vmem [shape: bf16[8,128], index: 0, kind: input, shape index: {}]
  %s1 = inlined_call_operand.hbm [shape: f32[128,128], index: 1, kind: input, shape index: {}]
  %s2 = inlined_call_operand.vmem [shape: f32[8,128], index: 2, kind: input, shape index: {}]
  %s3 = inlined_call_operand.vmem [shape: f32[8,1], index: 3, kind: input, shape index: {}]
  %s4 = inlined_call_operand.hbm [shape: f32[128,128], index: 4, kind: input, shape index: {}]
  %s5 = inlined_call_operand.vmem [shape: f32[1,128], index: 5, kind: input, shape index: {}]
  %s6 = inlined_call_operand.hbm [shape: f32[128,128], index: 6, kind: input, shape index: {}]
  %s7 = inlined_call_operand.vmem [shape: f32[1,128], index: 7, kind: input, shape index: {}]
  %s8 = inlined_call_operand.hbm [shape: f32[8,128], index: 8, kind: output, shape index: {}]
  %s9 = sld [smem:[#allocation0]]
  $region62: #{tpu_custom_call.1} parent=0
    _
  %s11 = ssub.s32 1, %s9
  %s12 = scalar_select 0, %s11, %s9
  $region1: #{tpu_custom_call.1} parent=0
    #allocation3 [shape = 'u8[65536]{0}', space=vmem, size = 0x10000, scoped, tag = 'input window, operand 1, single buffered']
    #allocation4 [shape = 's32[1]{0}', space=sflag, size = 0x4, scoped, tag = 'scoped memory for tpu_custom_call.1']
    #allocation5 [shape = 's32[1]{0}', space=sflag, size = 0x4, scoped, tag = 'scoped memory for tpu_custom_call.1']
    #allocation6 [shape = 'u8[65536]{0}', space=vmem, size = 0x10000, scoped, tag = 'input window, operand 4, single buffered']
    #allocation7 [shape = 's32[1]{0}', space=sflag, size = 0x4, scoped, tag = 'scoped memory for tpu_custom_call.1']
    #allocation8 [shape = 'u8[65536]{0}', space=vmem, size = 0x10000, scoped, tag = 'input window, operand 6, single buffered']
    #allocation9 [shape = 'u8[4096]{0}', space=vmem, size = 0x1000, scoped, tag = 'output window, operand 0, single buffered']
    %13 = vsyncpa [#allocation4], 0
    %14 = vsyncpa [#allocation7], 0
    %15 = vsyncpa [#allocation5], 0
    // Predicated region
    $region2: #{tpu_custom_call.1} parent=1 // pred_check
      _
    $region3: #{tpu_custom_call.1} parent=1 // pred_check_branch
      %17 = sbr.rel (0) target = $region5
    $region4: #{tpu_custom_call.1} parent=1 // pred_region
      _
    $region5: #{tpu_custom_call.1} parent=1 // pred_fallthru
      _
    // Predicated region
    $region6: #{tpu_custom_call.1} parent=1 // pred_check
      _
    $region7: #{tpu_custom_call.1} parent=1 // pred_check_branch
      %19 = sbr.rel (0) target = $region9
    $region8: #{tpu_custom_call.1} parent=1 // pred_region
      %s21 = ssub.s32 2048, 2048
      %22 = vsyncadd [#allocation4], %s21
      %s23 = sshll.u32 [#allocation3], 4
      %s24 = int_to_ptr.vmem [resolvable:$true] %s23
      %29 = dma.hbm_to_vmem [thread:$0]  %s1, 2048, %s24, [#allocation4], 128, 128, 8
    $region9: #{tpu_custom_call.1} parent=1 // pred_fallthru
      _
    // Predicated region
    $region10: #{tpu_custom_call.1} parent=1 // pred_check
      _
    $region11: #{tpu_custom_call.1} parent=1 // pred_check_branch
      %31 = sbr.rel (0) target = $region13
    $region12: #{tpu_custom_call.1} parent=1 // pred_region
      _
    $region13: #{tpu_custom_call.1} parent=1 // pred_fallthru
      _
    // Predicated region
    $region14: #{tpu_custom_call.1} parent=1 // pred_check
      _
    $region15: #{tpu_custom_call.1} parent=1 // pred_check_branch
      %33 = sbr.rel (0) target = $region17
    $region16: #{tpu_custom_call.1} parent=1 // pred_region
      _
    $region17: #{tpu_custom_call.1} parent=1 // pred_fallthru
      _
    // Predicated region
    $region18: #{tpu_custom_call.1} parent=1 // pred_check
      _
    $region19: #{tpu_custom_call.1} parent=1 // pred_check_branch
      %35 = sbr.rel (0) target = $region21
    $region20: #{tpu_custom_call.1} parent=1 // pred_region
      %s37 = ssub.s32 2048, 2048
      %38 = vsyncadd [#allocation7], %s37
      %s39 = sshll.u32 [#allocation6], 4
      %s40 = int_to_ptr.vmem [resolvable:$true] %s39
      %45 = dma.hbm_to_vmem [thread:$0]  %s4, 2048, %s40, [#allocation7], 128, 128, 8
    $region21: #{tpu_custom_call.1} parent=1 // pred_fallthru
      _
    // Predicated region
    $region22: #{tpu_custom_call.1} parent=1 // pred_check
      _
    $region23: #{tpu_custom_call.1} parent=1 // pred_check_branch
      %47 = sbr.rel (0) target = $region25
    $region24: #{tpu_custom_call.1} parent=1 // pred_region
      _
    $region25: #{tpu_custom_call.1} parent=1 // pred_fallthru
      _
    // Predicated region
    $region26: #{tpu_custom_call.1} parent=1 // pred_check
      _
    $region27: #{tpu_custom_call.1} parent=1 // pred_check_branch
      %49 = sbr.rel (0) target = $region29
    $region28: #{tpu_custom_call.1} parent=1 // pred_region
      %s51 = ssub.s32 2048, 2048
      %52 = vsyncadd [#allocation7], %s51
      %s53 = sshll.u32 [#allocation8], 4
      %s54 = int_to_ptr.vmem [resolvable:$true] %s53
      %59 = dma.hbm_to_vmem [thread:$0]  %s6, 2048, %s54, [#allocation7], 128, 128, 8
    $region29: #{tpu_custom_call.1} parent=1 // pred_fallthru
      _
    // Predicated region
    $region30: #{tpu_custom_call.1} parent=1 // pred_check
      _
    $region31: #{tpu_custom_call.1} parent=1 // pred_check_branch
      %61 = sbr.rel (0) target = $region33
    $region32: #{tpu_custom_call.1} parent=1 // pred_region
      _
    $region33: #{tpu_custom_call.1} parent=1 // pred_fallthru
      _
    // Predicated region
    $region34: #{tpu_custom_call.1} parent=1 // pred_check
      _
    $region35: #{tpu_custom_call.1} parent=1 // pred_check_branch
      %63 = sbr.rel (0) target = $region37
    $region36: #{tpu_custom_call.1} parent=1 // pred_region
      %64 = dma.done [#allocation4], 2048
    $region37: #{tpu_custom_call.1} parent=1 // pred_fallthru
      _
    // Predicated region
    $region38: #{tpu_custom_call.1} parent=1 // pred_check
      _
    $region39: #{tpu_custom_call.1} parent=1 // pred_check_branch
      %66 = sbr.rel (0) target = $region41
    $region40: #{tpu_custom_call.1} parent=1 // pred_region
      %67 = dma.done [#allocation7], 2048
    $region41: #{tpu_custom_call.1} parent=1 // pred_fallthru
      _
    // Predicated region
    $region42: #{tpu_custom_call.1} parent=1 // pred_check
      _
    $region43: #{tpu_custom_call.1} parent=1 // pred_check_branch
      %69 = sbr.rel (0) target = $region45
    $region44: #{tpu_custom_call.1} parent=1 // pred_region
      %70 = dma.done [#allocation7], 2048
    $region45: #{tpu_custom_call.1} parent=1 // pred_fallthru
      _
    %p71 = scmp.eq.s32.totalorder 0, 0
    // Predicated region
    $region46: #{tpu_custom_call.1} parent=1 // pred_check
      %p72 = pneg %p71
    $region47: #{tpu_custom_call.1} parent=1 // pred_check_branch
      %74 = sbr.rel (%p72) target = $region49
    $region48: #{tpu_custom_call.1} parent=1 // pred_region
      %75 = vst [vmem:[#allocation2] sm:$0xff] 0.0
    $region49: #{tpu_custom_call.1} parent=1 // pred_fallthru
      _
    %v76 = vld [vmem:[#allocation2] sm:$0xff]
    %v77 = vld [vmem:[%s0] sm:$0xf]
    %v78 = vunpack.c.l.bf16 %v77
    %v79 = vld [vmem:[#allocation3] sm:$0xff]
    %v80 = vld [vmem:[#allocation3 + $0x8] sm:$0xff]
    %v81 = vld [vmem:[#allocation3 + $0x10] sm:$0xff]
    %v82 = vld [vmem:[#allocation3 + $0x18] sm:$0xff]
    %v83 = vld [vmem:[#allocation3 + $0x20] sm:$0xff]
    %v84 = vld [vmem:[#allocation3 + $0x28] sm:$0xff]
    %v85 = vld [vmem:[#allocation3 + $0x30] sm:$0xff]
    %v86 = vld [vmem:[#allocation3 + $0x38] sm:$0xff]
    %v87 = vld [vmem:[#allocation3 + $0x40] sm:$0xff]
    %v88 = vld [vmem:[#allocation3 + $0x48] sm:$0xff]
    %v89 = vld [vmem:[#allocation3 + $0x50] sm:$0xff]
    %v90 = vld [vmem:[#allocation3 + $0x58] sm:$0xff]
    %v91 = vld [vmem:[#allocation3 + $0x60] sm:$0xff]
    %v92 = vld [vmem:[#allocation3 + $0x68] sm:$0xff]
    %v93 = vld [vmem:[#allocation3 + $0x70] sm:$0xff]
    %v94 = vld [vmem:[#allocation3 + $0x78] sm:$0xff]
    %95 = vmatprep.subr.mxu0 0.0
    %96 = vmatpush1.msra.mxu0 %v94
    %97 = vmatprep.subr.mxu0 0.0
    %98 = vmatpush1.msra.mxu0 %v93
    %99 = vmatprep.subr.mxu0 0.0
    %100 = vmatpush1.msra.mxu0 %v92
    %101 = vmatprep.subr.mxu0 0.0
    %102 = vmatpush1.msra.mxu0 %v91
    %103 = vmatprep.subr.mxu0 0.0
    %104 = vmatpush1.msra.mxu0 %v90
    %105 = vmatprep.subr.mxu0 0.0
    %106 = vmatpush1.msra.mxu0 %v89
    %107 = vmatprep.subr.mxu0 0.0
    %108 = vmatpush1.msra.mxu0 %v88
    %109 = vmatprep.subr.mxu0 0.0
    %110 = vmatpush1.msra.mxu0 %v87
    %111 = vmatprep.subr.mxu0 0.0
    %112 = vmatpush1.msra.mxu0 %v86
    %113 = vmatprep.subr.mxu0 0.0
    %114 = vmatpush1.msra.mxu0 %v85
    %115 = vmatprep.subr.mxu0 0.0
    %116 = vmatpush1.msra.mxu0 %v84
    %117 = vmatprep.subr.mxu0 0.0
    %118 = vmatpush1.msra.mxu0 %v83
    %119 = vmatprep.subr.mxu0 0.0
    %120 = vmatpush1.msra.mxu0 %v82
    %121 = vmatprep.subr.mxu0 0.0
    %122 = vmatpush1.msra.mxu0 %v81
    %123 = vmatprep.subr.mxu0 0.0
    %124 = vmatpush1.msra.mxu0 %v80
    %125 = vmatprep.subr.mxu0 0.0
    %126 = vmatpush1.msra.mxu0 %v79
    %127 = vmatprep.subr.mxu0 0.0
    %128 = vmatpush2.msra.mxu0 0.0
    %129 = vmatprep.subr.mxu0 0.0
    %130 = vmatpush2.msra.mxu0 0.0
    %131 = vmatprep.subr.mxu0 0.0
    %132 = vmatpush2.msra.mxu0 0.0
    %133 = vmatprep.subr.mxu0 0.0
    %134 = vmatpush2.msra.mxu0 0.0
    %135 = vmatprep.subr.mxu0 0.0
    %136 = vmatpush2.msra.mxu0 0.0
    %137 = vmatprep.subr.mxu0 0.0
    %138 = vmatpush2.msra.mxu0 0.0
    %139 = vmatprep.subr.mxu0 0.0
    %140 = vmatpush2.msra.mxu0 0.0
    %141 = vmatprep.subr.mxu0 0.0
    %142 = vmatpush2.msra.mxu0 0.0
    %143 = vmatprep.subr.mxu0 0.0
    %144 = vmatpush2.msra.mxu0 0.0
    %145 = vmatprep.subr.mxu0 0.0
    %146 = vmatpush2.msra.mxu0 0.0
    %147 = vmatprep.subr.mxu0 0.0
    %148 = vmatpush2.msra.mxu0 0.0
    %149 = vmatprep.subr.mxu0 0.0
    %150 = vmatpush2.msra.mxu0 0.0
    %151 = vmatprep.subr.mxu0 0.0
    %152 = vmatpush2.msra.mxu0 0.0
    %153 = vmatprep.subr.mxu0 0.0
    %154 = vmatpush2.msra.mxu0 0.0
    %155 = vmatprep.subr.mxu0 0.0
    %156 = vmatpush2.msra.mxu0 0.0
    %157 = vmatprep.subr.mxu0 0.0
    %158 = vmatpush2.msra.mxu0 0.0
    %159 = vmatprep.mubr.f32.mxu0 0.0
    %160 = vmatmul.mubr.f32.gmra.mxu0 %v78
    %v161 = vpop.f32.mrf.mxu0
    %v162 = vadd.f32 0.0, %v161
    %v163 = vpop.f32.mrf.mxu0
    %164 = vdwg.mxu0
    %v165 = vadd.f32 %v76, %v162
    %166 = vst [vmem:[#allocation2] sm:$0xff] %v165
    // Predicated region
    $region50: #{tpu_custom_call.1} parent=1 // pred_check
      %p167 = pneg %p71
    $region51: #{tpu_custom_call.1} parent=1 // pred_check_branch
      %169 = sbr.rel (%p167) target = $region53
    $region52: #{tpu_custom_call.1} parent=1 // pred_region
      %v170 = vld [vmem:[#allocation2] sm:$0xff]
      %v171 = vld [vmem:[#allocation6] sm:$0xff]
      %v172 = vld [vmem:[#allocation6 + $0x8] sm:$0xff]
      %v173 = vld [vmem:[#allocation6 + $0x10] sm:$0xff]
      %v174 = vld [vmem:[#allocation6 + $0x18] sm:$0xff]
      %v175 = vld [vmem:[#allocation6 + $0x20] sm:$0xff]
      %v176 = vld [vmem:[#allocation6 + $0x28] sm:$0xff]
      %v177 = vld [vmem:[#allocation6 + $0x30] sm:$0xff]
      %v178 = vld [vmem:[#allocation6 + $0x38] sm:$0xff]
      %v179 = vld [vmem:[#allocation6 + $0x40] sm:$0xff]
      %v180 = vld [vmem:[#allocation6 + $0x48] sm:$0xff]
      %v181 = vld [vmem:[#allocation6 + $0x50] sm:$0xff]
      %v182 = vld [vmem:[#allocation6 + $0x58] sm:$0xff]
      %v183 = vld [vmem:[#allocation6 + $0x60] sm:$0xff]
      %v184 = vld [vmem:[#allocation6 + $0x68] sm:$0xff]
      %v185 = vld [vmem:[#allocation6 + $0x70] sm:$0xff]
      %v186 = vld [vmem:[#allocation6 + $0x78] sm:$0xff]
      %v187 = vld [vmem:[%s5] sm:$0x1]
      %v189 = vlaneseq
      %v190 = vshrl.u32 %v189, 7
      %v191 = vsub.s32 0, %v190
      %v192 = vrot.slane %v187, %v191
      %194 = vmatprep.subr.mxu0 0.0
      %195 = vmatpush1.msra.mxu0 %v186
      %196 = vmatprep.subr.mxu0 0.0
      %197 = vmatpush1.msra.mxu0 %v185
      %198 = vmatprep.subr.mxu0 0.0
      %199 = vmatpush1.msra.mxu0 %v184
      %200 = vmatprep.subr.mxu0 0.0
      %201 = vmatpush1.msra.mxu0 %v183
      %202 = vmatprep.subr.mxu0 0.0
      %203 = vmatpush1.msra.mxu0 %v182
      %204 = vmatprep.subr.mxu0 0.0
      %205 = vmatpush1.msra.mxu0 %v181
      %206 = vmatprep.subr.mxu0 0.0
      %207 = vmatpush1.msra.mxu0 %v180
      %208 = vmatprep.subr.mxu0 0.0
      %209 = vmatpush1.msra.mxu0 %v179
      %210 = vmatprep.subr.mxu0 0.0
      %211 = vmatpush1.msra.mxu0 %v178
      %212 = vmatprep.subr.mxu0 0.0
      %213 = vmatpush1.msra.mxu0 %v177
      %214 = vmatprep.subr.mxu0 0.0
      %215 = vmatpush1.msra.mxu0 %v176
      %216 = vmatprep.subr.mxu0 0.0
      %217 = vmatpush1.msra.mxu0 %v175
      %218 = vmatprep.subr.mxu0 0.0
      %219 = vmatpush1.msra.mxu0 %v174
      %220 = vmatprep.subr.mxu0 0.0
      %221 = vmatpush1.msra.mxu0 %v173
      %222 = vmatprep.subr.mxu0 0.0
      %223 = vmatpush1.msra.mxu0 %v172
      %224 = vmatprep.subr.mxu0 0.0
      %225 = vmatpush1.msra.mxu0 %v171
      %226 = vmatprep.subr.mxu0 0.0
      %227 = vmatpush2.msra.mxu0 0.0
      %228 = vmatprep.subr.mxu0 0.0
      %229 = vmatpush2.msra.mxu0 0.0
      %230 = vmatprep.subr.mxu0 0.0
      %231 = vmatpush2.msra.mxu0 0.0
      %232 = vmatprep.subr.mxu0 0.0
      %233 = vmatpush2.msra.mxu0 0.0
      %234 = vmatprep.subr.mxu0 0.0
      %235 = vmatpush2.msra.mxu0 0.0
      %236 = vmatprep.subr.mxu0 0.0
      %237 = vmatpush2.msra.mxu0 0.0
      %238 = vmatprep.subr.mxu0 0.0
      %239 = vmatpush2.msra.mxu0 0.0
      %240 = vmatprep.subr.mxu0 0.0
      %241 = vmatpush2.msra.mxu0 0.0
      %242 = vmatprep.subr.mxu0 0.0
      %243 = vmatpush2.msra.mxu0 0.0
      %244 = vmatprep.subr.mxu0 0.0
      %245 = vmatpush2.msra.mxu0 0.0
      %246 = vmatprep.subr.mxu0 0.0
      %247 = vmatpush2.msra.mxu0 0.0
      %248 = vmatprep.subr.mxu0 0.0
      %249 = vmatpush2.msra.mxu0 0.0
      %250 = vmatprep.subr.mxu0 0.0
      %251 = vmatpush2.msra.mxu0 0.0
      %252 = vmatprep.subr.mxu0 0.0
      %253 = vmatpush2.msra.mxu0 0.0
      %254 = vmatprep.subr.mxu0 0.0
      %255 = vmatpush2.msra.mxu0 0.0
      %256 = vmatprep.subr.mxu0 0.0
      %257 = vmatpush2.msra.mxu0 0.0
      %258 = vmatprep.mubr.f32.mxu0 0.0
      %259 = vmatmul.mubr.f32.gmra.mxu0 %v170
      %v260 = vpop.f32.mrf.mxu0
      %v261 = vadd.f32 %v192, %v260
      %v262 = vpop.f32.mrf.mxu0
      %263 = vdwg.mxu0
      %v264 = vmax.f32 %v261, 0.0
      %v265 = vld [vmem:[#allocation8] sm:$0xff]
      %v266 = vld [vmem:[#allocation8 + $0x8] sm:$0xff]
      %v267 = vld [vmem:[#allocation8 + $0x10] sm:$0xff]
      %v268 = vld [vmem:[#allocation8 + $0x18] sm:$0xff]
      %v269 = vld [vmem:[#allocation8 + $0x20] sm:$0xff]
      %v270 = vld [vmem:[#allocation8 + $0x28] sm:$0xff]
      %v271 = vld [vmem:[#allocation8 + $0x30] sm:$0xff]
      %v272 = vld [vmem:[#allocation8 + $0x38] sm:$0xff]
      %v273 = vld [vmem:[#allocation8 + $0x40] sm:$0xff]
      %v274 = vld [vmem:[#allocation8 + $0x48] sm:$0xff]
      %v275 = vld [vmem:[#allocation8 + $0x50] sm:$0xff]
      %v276 = vld [vmem:[#allocation8 + $0x58] sm:$0xff]
      %v277 = vld [vmem:[#allocation8 + $0x60] sm:$0xff]
      %v278 = vld [vmem:[#allocation8 + $0x68] sm:$0xff]
      %v279 = vld [vmem:[#allocation8 + $0x70] sm:$0xff]
      %v280 = vld [vmem:[#allocation8 + $0x78] sm:$0xff]
      %v281 = vld [vmem:[%s7] sm:$0x1]
      %v283 = vlaneseq
      %v284 = vshrl.u32 %v283, 7
      %v285 = vsub.s32 0, %v284
      %v286 = vrot.slane %v281, %v285
      %288 = vmatprep.subr.mxu0 0.0
      %289 = vmatpush1.msra.mxu0 %v280
      %290 = vmatprep.subr.mxu0 0.0
      %291 = vmatpush1.msra.mxu0 %v279
      %292 = vmatprep.subr.mxu0 0.0
      %293 = vmatpush1.msra.mxu0 %v278
      %294 = vmatprep.subr.mxu0 0.0
      %295 = vmatpush1.msra.mxu0 %v277
      %296 = vmatprep.subr.mxu0 0.0
      %297 = vmatpush1.msra.mxu0 %v276
      %298 = vmatprep.subr.mxu0 0.0
      %299 = vmatpush1.msra.mxu0 %v275
      %300 = vmatprep.subr.mxu0 0.0
      %301 = vmatpush1.msra.mxu0 %v274
      %302 = vmatprep.subr.mxu0 0.0
      %303 = vmatpush1.msra.mxu0 %v273
      %304 = vmatprep.subr.mxu0 0.0
      %305 = vmatpush1.msra.mxu0 %v272
      %306 = vmatprep.subr.mxu0 0.0
      %307 = vmatpush1.msra.mxu0 %v271
      %308 = vmatprep.subr.mxu0 0.0
      %309 = vmatpush1.msra.mxu0 %v270
      %310 = vmatprep.subr.mxu0 0.0
      %311 = vmatpush1.msra.mxu0 %v269
      %312 = vmatprep.subr.mxu0 0.0
      %313 = vmatpush1.msra.mxu0 %v268
      %314 = vmatprep.subr.mxu0 0.0
      %315 = vmatpush1.msra.mxu0 %v267
      %316 = vmatprep.subr.mxu0 0.0
      %317 = vmatpush1.msra.mxu0 %v266
      %318 = vmatprep.subr.mxu0 0.0
      %319 = vmatpush1.msra.mxu0 %v265
      %320 = vmatprep.subr.mxu0 0.0
      %321 = vmatpush2.msra.mxu0 0.0
      %322 = vmatprep.subr.mxu0 0.0
      %323 = vmatpush2.msra.mxu0 0.0
      %324 = vmatprep.subr.mxu0 0.0
      %325 = vmatpush2.msra.mxu0 0.0
      %326 = vmatprep.subr.mxu0 0.0
      %327 = vmatpush2.msra.mxu0 0.0
      %328 = vmatprep.subr.mxu0 0.0
      %329 = vmatpush2.msra.mxu0 0.0
      %330 = vmatprep.subr.mxu0 0.0
      %331 = vmatpush2.msra.mxu0 0.0
      %332 = vmatprep.subr.mxu0 0.0
      %333 = vmatpush2.msra.mxu0 0.0
      %334 = vmatprep.subr.mxu0 0.0
      %335 = vmatpush2.msra.mxu0 0.0
      %336 = vmatprep.subr.mxu0 0.0
      %337 = vmatpush2.msra.mxu0 0.0
      %338 = vmatprep.subr.mxu0 0.0
      %339 = vmatpush2.msra.mxu0 0.0
      %340 = vmatprep.subr.mxu0 0.0
      %341 = vmatpush2.msra.mxu0 0.0
      %342 = vmatprep.subr.mxu0 0.0
      %343 = vmatpush2.msra.mxu0 0.0
      %344 = vmatprep.subr.mxu0 0.0
      %345 = vmatpush2.msra.mxu0 0.0
      %346 = vmatprep.subr.mxu0 0.0
      %347 = vmatpush2.msra.mxu0 0.0
      %348 = vmatprep.subr.mxu0 0.0
      %349 = vmatpush2.msra.mxu0 0.0
      %350 = vmatprep.subr.mxu0 0.0
      %351 = vmatpush2.msra.mxu0 0.0
      %352 = vmatprep.mubr.f32.mxu0 0.0
      %353 = vmatmul.mubr.f32.gmra.mxu0 %v264
      %v354 = vpop.f32.mrf.mxu0
      %v355 = vadd.f32 %v286, %v354
      %v356 = vpop.f32.mrf.mxu0
      %357 = vdwg.mxu0
      %v358 = vld [vmem:[%s2] sm:$0xff]
      %v359 = vld [vmem:[%s3] sm:$0xff]
      %361 = vset.pattern.permute.xlu0 0
      %362 = vperm.xlu0 %361, %v359
      %v363 = vpop.permute.xlu0 %362
      %v365 = vmul.f32 %v355, %v363
      %v366 = vadd.f32 %v358, %v365
      %367 = vst [vmem:[#allocation9] sm:$0xff] %v366
    $region53: #{tpu_custom_call.1} parent=1 // pred_fallthru
      _
    // Predicated region
    $region54: #{tpu_custom_call.1} parent=1 // pred_check
      _
    $region55: #{tpu_custom_call.1} parent=1 // pred_check_branch
      %369 = sbr.rel (0) target = $region57
    $region56: #{tpu_custom_call.1} parent=1 // pred_region
      %s371 = ssub.s32 128, 128
      %372 = vsyncadd [#allocation5], %s371
      %s374 = sshll.u32 [#allocation9], 4
      %s375 = int_to_ptr.vmem [resolvable:$true] %s374
      %377 = dma.vmem_to_hbm [thread:$0]  %s375, 128, %s8, [#allocation5]
    $region57: #{tpu_custom_call.1} parent=1 // pred_fallthru
      _
    // Predicated region
    $region58: #{tpu_custom_call.1} parent=1 // pred_check
      _
    $region59: #{tpu_custom_call.1} parent=1 // pred_check_branch
      %379 = sbr.rel (0) target = $region61
    $region60: #{tpu_custom_call.1} parent=1 // pred_region
      %380 = dma.done [#allocation5], 128
    $region61: #{tpu_custom_call.1} parent=1 // pred_fallthru
      _
    %381 = vsyncpa [#allocation4], 1
    %382 = vsyncpa [#allocation7], 1
    %383 = vsyncpa [#allocation5], 1

</llo_original>
